<compile_context>
chip_gen: v7x
topology: tpu7x:2x2x1
jax: 0.10.0
libtpu: 0.0.40
codegen_flags: <defaults>
</compile_context>

<pallas_src>
import functools

import jax
import jax.numpy as jnp
from jax.experimental import pallas as pl
from jax.experimental.pallas import tpu as pltpu

_LANE = 128


def _round_up(x, m):
    return (x + m - 1) // m * m


def _dense_lanes(n):
    """Largest lane width in {1024, 512, 256, 128} that divides n (0 if none)."""
    for cand in (1024, 512, 256, 128):
        if n % cand == 0:
            return cand
    return 0


def _pick_row_block(rows, lanes, coord_isz, valid_isz, has_is3d,
                    *, budget_bytes=8 << 20, target_steps=8):
    """Row-block size for (rows, lanes) streaming tiles + its VMEM footprint.

    Footprint = (2 coord inputs + output) * coord_isz + valid * valid_isz
                (+ is_3D column padded to 128 lanes), all with the last dim
    rounded up to 128 lanes and the row block rounded up to a sublane group,
    times 2 for the pipeline's double buffering.  The 8 MiB budget keeps the
    total well under the smallest scoped-VMEM default (16 MiB on v5e).
    Aims for several grid steps (and never just one when the batch is big
    enough to split) so v7x can shard the "parallel" axis across both
    TensorCores and writeback overlaps the next tile's reads.
    """
    sub = 8 * (4 // max(1, min(coord_isz, valid_isz)))   # 8 f32 / 16 bf16 / 32 i8
    lanes_pad = _round_up(lanes, _LANE)
    per_row = lanes_pad * (3 * coord_isz + valid_isz)
    col_row = _LANE * coord_isz if has_is3d else 0

    def footprint(tb):
        return 2 * _round_up(tb, sub) * (per_row + col_row)   # x2: double buffer

    if rows <= sub:
        return rows, footprint(rows)          # tiny batch: single full block

    tb_budget = max(sub, (budget_bytes // footprint(sub)) * sub)
    tb_split = max(sub, _round_up(pl.cdiv(rows, target_steps), sub))
    tb = min(tb_budget, tb_split)
    if pl.cdiv(rows, tb) < 2:                 # v7x: keep >=2 parallel grid steps
        tb = max(sub, _round_up(pl.cdiv(rows, 2), sub))
    return tb, footprint(tb)


def _vmem_limit(estimate_bytes):
    # Padded, double-buffered estimate plus headroom, clamped to a value that
    # is safe on every generation (v7x scoped default is 32 MiB of 64 MiB).
    return int(min(max(estimate_bytes * 2, 16 << 20), 32 << 20))


def _coord_loss_kernel(out_ref, gt_ref, valid_ref, loss_ref):
    # All refs: (TB, lanes) tiles; `valid` is cast in-kernel (free VPU filler).
    l = jnp.abs(out_ref[...] - gt_ref[...])
    loss_ref[...] = l * valid_ref[...].astype(l.dtype)


def _coord_loss_kernel_3d(out_ref, gt_ref, valid_ref, is3d_ref, loss_ref, *,
                          num_channels):
    # out/gt/valid/loss refs: (TB, J*C); is3d_ref: (TB, 1) per-batch flag.
    l = jnp.abs(out_ref[...] - gt_ref[...]) * valid_ref[...].astype(out_ref.dtype)
    # Channel index from the lane position of the flattened (J, C) layout;
    # channels >= 2 (z and beyond) get gated by is_3D.  One iota + mod +
    # compare + select per tile; all free under the HBM-bound roofline.
    ch = jax.lax.broadcasted_iota(jnp.int32, l.shape, dimension=1) % num_channels
    gate = jnp.where(ch >= 2, is3d_ref[...], jnp.ones((), l.dtype))
    loss_ref[...] = l * gate


def _coord_loss_jnp(coord_out, coord_gt, valid, is_3D=None):
    """Fused-XLA baseline (also the reference for testing)."""
    loss = jnp.abs(coord_out - coord_gt) * valid.astype(coord_out.dtype)
    if is_3D is not None:
        gate = is_3D[:, None, None].astype(loss.dtype)
        loss = jnp.concatenate((loss[:, :, :2], loss[:, :, 2:] * gate), axis=2)
    return loss


@functools.partial(jax.jit, static_argnames=("force_pallas",))
def coord_loss(coord_out, coord_gt, valid, is_3D=None, *, force_pallas=False):
    B, J, C = coord_out.shape
    dt = coord_out.dtype
    n_elems = B * J * C
    coord_isz = jnp.dtype(dt).itemsize

    # Typical CoordLoss tensors are tens of KB: the fused XLA elementwise op
    # beats the fixed pallas_call launch / pipeline-fill overhead there.
    if not force_pallas and n_elems * coord_isz < (256 << 10):
        return _coord_loss_jnp(coord_out, coord_gt, valid, is_3D)

    # Keep `valid` in its native narrow dtype (cast happens inside the kernel).
    if valid.dtype == jnp.bool_:
        valid = valid.astype(jnp.uint8)
    valid_isz = jnp.dtype(valid.dtype).itemsize
    params = lambda est: pltpu.CompilerParams(
        dimension_semantics=("parallel",), vmem_limit_bytes=_vmem_limit(est))

    if is_3D is None:
        # Pure elementwise: retile lane-dense when the element count allows it
        # (full vreg occupancy, unmasked stores); otherwise keep (B, J*C),
        # whose full last dim is still a legal block shape.
        L = _dense_lanes(n_elems)
        rows, lanes = (n_elems // L, L) if L else (B, J * C)
        co = coord_out.reshape(rows, lanes)
        cg = coord_gt.reshape(rows, lanes)
        va = valid.reshape(rows, lanes)
        tb, est = _pick_row_block(rows, lanes, coord_isz, valid_isz, False)
        tile = pl.BlockSpec((tb, lanes), lambda i: (i, 0))
        loss = pl.pallas_call(
            _coord_loss_kernel,
            out_shape=jax.ShapeDtypeStruct((rows, lanes), dt),
            grid=(pl.cdiv(rows, tb),),
            in_specs=[tile, tile, tile],
            out_specs=tile,
            compiler_params=params(est),
        )(co, cg, va)
        return loss.reshape(B, J, C)

    # is_3D path: batch stays on sublanes so the per-batch flag can be fed as
    # a tiny (B, 1) VMEM column and broadcast across lanes inside the kernel.
    JC = J * C
    co = coord_out.reshape(B, JC)
    cg = coord_gt.reshape(B, JC)
    va = valid.reshape(B, JC)
    is3d_col = is_3D.reshape(B, 1).astype(dt)      # B elements — negligible
    tb, est = _pick_row_block(B, JC, coord_isz, valid_isz, True)
    tile = pl.BlockSpec((tb, JC), lambda i: (i, 0))
    col = pl.BlockSpec((tb, 1), lambda i: (i, 0))
    loss = pl.pallas_call(
        functools.partial(_coord_loss_kernel_3d, num_channels=C),
        out_shape=jax.ShapeDtypeStruct((B, JC), dt),
        grid=(pl.cdiv(B, tb),),
        in_specs=[tile, tile, tile, col],
        out_specs=tile,
        compiler_params=params(est),
    )(co, cg, va, is3d_col)
    return loss.reshape(B, J, C)


if __name__ == "__main__":
    key = jax.random.PRNGKey(0)
    k1, k2, k3, k4 = jax.random.split(key, 4)

    # --- is_3D-gated path (Pallas kernel forced on despite the tiny shape) ---
    B, J, C = 2, 8, 3
    coord_out = jax.random.normal(k1, (B, J, C), dtype=jnp.float32)
    coord_gt = jax.random.normal(k2, (B, J, C), dtype=jnp.float32)
    valid = (jax.random.uniform(k3, (B, J, C)) > 0.3).astype(jnp.float32)
    is_3D = (jax.random.uniform(k4, (B,)) > 0.5).astype(jnp.float32)

    out_3d = coord_loss(coord_out, coord_gt, valid, is_3D, force_pallas=True)
    jax.block_until_ready(out_3d)
    ref_3d = _coord_loss_jnp(coord_out, coord_gt, valid, is_3D)
    assert jnp.allclose(out_3d, ref_3d, atol=1e-6), "mismatch (is_3D path)"

    # --- no-is_3D path (exercises the lane-dense retiling: 16*8*3 = 384 = 3*128) ---
    B2, J2, C2 = 16, 8, 3
    k5, k6, k7 = jax.random.split(k4, 3)
    co2 = jax.random.normal(k5, (B2, J2, C2), dtype=jnp.float32)
    cg2 = jax.random.normal(k6, (B2, J2, C2), dtype=jnp.float32)
    va2 = (jax.random.uniform(k7, (B2, J2, C2)) > 0.3).astype(jnp.float32)

    out_no3d = coord_loss(co2, cg2, va2, None, force_pallas=True)
    jax.block_until_ready(out_no3d)
    ref_no3d = _coord_loss_jnp(co2, cg2, va2, None)
    assert jnp.allclose(out_no3d, ref_no3d, atol=1e-6), "mismatch (no is_3D path)"

    print("KERNEL_OK")
</pallas_src>

<mosaic_0001>
module attributes {stable_mosaic.version = 11 : i64} {
  func.func @_coord_loss_kernel_3d(%arg0: i32, %arg1: memref<2x24xf32, #tpu.memory_space<vmem>>, %arg2: memref<2x24xf32, #tpu.memory_space<vmem>>, %arg3: memref<2x24xf32, #tpu.memory_space<vmem>>, %arg4: memref<2x1xf32, #tpu.memory_space<vmem>>, %arg5: memref<2x24xf32, #tpu.memory_space<vmem>>) attributes {dimension_semantics = [#tpu.dimension_semantics<parallel>], iteration_bounds = array<i64: 1>, scalar_prefetch = 0 : i64, scratch_operands = 0 : i64, tpu.core_type = #tpu.core_type<tc>, window_params = [{transform_indices = @transform_0, window_bounds = array<i64: 2, 24>}, {transform_indices = @transform_1, window_bounds = array<i64: 2, 24>}, {transform_indices = @transform_2, window_bounds = array<i64: 2, 24>}, {transform_indices = @transform_3, window_bounds = array<i64: 2, 1>}, {transform_indices = @transform_4, window_bounds = array<i64: 2, 24>}]} {
    %c0 = arith.constant 0 : index
    %c0_0 = arith.constant 0 : index
    %0 = vector.load %arg1[%c0, %c0_0] : memref<2x24xf32, #tpu.memory_space<vmem>>, vector<2x24xf32>
    %c0_1 = arith.constant 0 : index
    %c0_2 = arith.constant 0 : index
    %1 = vector.load %arg2[%c0_1, %c0_2] : memref<2x24xf32, #tpu.memory_space<vmem>>, vector<2x24xf32>
    %2 = arith.subf %0, %1 : vector<2x24xf32>
    %3 = math.absf %2 : vector<2x24xf32>
    %c0_3 = arith.constant 0 : index
    %c0_4 = arith.constant 0 : index
    %4 = vector.load %arg3[%c0_3, %c0_4] : memref<2x24xf32, #tpu.memory_space<vmem>>, vector<2x24xf32>
    %5 = arith.mulf %3, %4 : vector<2x24xf32>
    %6 = tpu.iota {dimensions = array<i32: 1>} : vector<2x24xi32>
    %c3_i32 = arith.constant 3 : i32
    %c0_i32 = arith.constant 0 : i32
    %7 = arith.cmpi eq, %c3_i32, %c0_i32 : i32
    %c1_i32 = arith.constant 1 : i32
    %8 = arith.select %7, %c1_i32, %c3_i32 : i32
    %9 = vector.broadcast %8 : i32 to vector<2x24xi32>
    %10 = arith.remsi %6, %9 : vector<2x24xi32>
    %c0_i32_5 = arith.constant 0 : i32
    %11 = vector.broadcast %c0_i32_5 : i32 to vector<2x24xi32>
    %12 = arith.cmpi ne, %10, %11 : vector<2x24xi32>
    %c0_i32_6 = arith.constant 0 : i32
    %13 = vector.broadcast %c0_i32_6 : i32 to vector<2x24xi32>
    %14 = arith.cmpi slt, %10, %13 : vector<2x24xi32>
    %c0_i32_7 = arith.constant 0 : i32
    %15 = arith.cmpi slt, %8, %c0_i32_7 : i32
    %16 = vector.broadcast %15 : i1 to vector<2x24xi1>
    %17 = vector.broadcast %16 : vector<2x24xi1> to vector<2x24xi1>
    %18 = arith.xori %14, %17 : vector<2x24xi1>
    %19 = arith.andi %18, %12 : vector<2x24xi1>
    %20 = vector.broadcast %8 : i32 to vector<2x24xi32>
    %21 = arith.addi %10, %20 : vector<2x24xi32>
    %22 = arith.select %19, %21, %10 : vector<2x24xi1>, vector<2x24xi32>
    %c2_i32 = arith.constant 2 : i32
    %23 = vector.broadcast %c2_i32 : i32 to vector<2x24xi32>
    %24 = arith.cmpi sge, %22, %23 : vector<2x24xi32>
    %c0_8 = arith.constant 0 : index
    %c0_9 = arith.constant 0 : index
    %25 = vector.load %arg4[%c0_8, %c0_9] : memref<2x1xf32, #tpu.memory_space<vmem>>, vector<2x1xf32>
    %cst = arith.constant 1.000000e+00 : f32
    %26 = vector.shape_cast %25 : vector<2x1xf32> to vector<2x1xf32>
    %27 = vector.broadcast %26 : vector<2x1xf32> to vector<2x24xf32>
    %28 = vector.broadcast %cst : f32 to vector<2x24xf32>
    %29 = arith.select %24, %27, %28 : vector<2x24xi1>, vector<2x24xf32>
    %30 = arith.mulf %5, %29 : vector<2x24xf32>
    %c0_10 = arith.constant 0 : index
    %c0_11 = arith.constant 0 : index
    %31 = vector.load %arg5[%c0_10, %c0_11] : memref<2x24xf32, #tpu.memory_space<vmem>>, vector<2x24xf32>
    tpu.vector_store %arg5[%c0_10, %c0_11], %30 {strides = array<i32>} : memref<2x24xf32, #tpu.memory_space<vmem>>, vector<2x24xf32>,
    return
  }
  func.func @transform_0(%arg0: i32) -> (i32, i32) {
    %c0_i32 = arith.constant 0 : i32
    %c0_i32_0 = arith.constant 0 : i32
    return %arg0, %c0_i32 : i32, i32
  }
  func.func @transform_1(%arg0: i32) -> (i32, i32) {
    %c0_i32 = arith.constant 0 : i32
    %c0_i32_0 = arith.constant 0 : i32
    return %arg0, %c0_i32 : i32, i32
  }
  func.func @transform_2(%arg0: i32) -> (i32, i32) {
    %c0_i32 = arith.constant 0 : i32
    %c0_i32_0 = arith.constant 0 : i32
    return %arg0, %c0_i32 : i32, i32
  }
  func.func @transform_3(%arg0: i32) -> (i32, i32) {
    %c0_i32 = arith.constant 0 : i32
    %c0_i32_0 = arith.constant 0 : i32
    return %arg0, %c0_i32 : i32, i32
  }
  func.func @transform_4(%arg0: i32) -> (i32, i32) {
    %c0_i32 = arith.constant 0 : i32
    %c0_i32_0 = arith.constant 0 : i32
    return %arg0, %c0_i32 : i32, i32
  }
}

</mosaic_0001>

<llo_original>
// kernel: coord_loss.1
$region0: #{coord_loss.1}
  #allocation0 [shape = 'u32[]', space=smem, size = 0x4, offset = 0x4, fixed_abs, tag = 'smem constant byte address 0x4 - core index']
  #allocation1 [shape = 'u32[144,128]{1,0:T(1,128)}', space=vmem, size = 0x12000, scoped, tag = 'internal scratch']
  %s0 = inlined_call_operand.vmem [shape: f32[2,24], index: 0, kind: input, shape index: {}]
  %s1 = inlined_call_operand.vmem [shape: f32[2,24], index: 1, kind: input, shape index: {}]
  %s2 = inlined_call_operand.vmem [shape: f32[2,24], index: 2, kind: input, shape index: {}]
  %s3 = inlined_call_operand.vmem [shape: f32[2,1], index: 3, kind: input, shape index: {}]
  %s4 = inlined_call_operand.vmem [shape: f32[2,24], index: 4, kind: output, shape index: {}]
  %s5 = sld [smem:[#allocation0]]
  $region26: #{coord_loss.1} parent=0
    _
  %s7 = ssub.s32 1, %s5
  %s8 = scalar_select 0, %s7, %s5
  // Predicated region
  $region2: #{coord_loss.1} parent=0 // pred_check
    _
  $region3: #{coord_loss.1} parent=0 // pred_check_branch
    %10 = sbr.rel (0) target = $region5
  $region4: #{coord_loss.1} parent=0 // pred_region
    _
  $region5: #{coord_loss.1} parent=0 // pred_fallthru
    _
  // Predicated region
  $region6: #{coord_loss.1} parent=0 // pred_check
    _
  $region7: #{coord_loss.1} parent=0 // pred_check_branch
    %12 = sbr.rel (0) target = $region9
  $region8: #{coord_loss.1} parent=0 // pred_region
    _
  $region9: #{coord_loss.1} parent=0 // pred_fallthru
    _
  // Predicated region
  $region10: #{coord_loss.1} parent=0 // pred_check
    _
  $region11: #{coord_loss.1} parent=0 // pred_check_branch
    %14 = sbr.rel (0) target = $region13
  $region12: #{coord_loss.1} parent=0 // pred_region
    _
  $region13: #{coord_loss.1} parent=0 // pred_fallthru
    _
  // Predicated region
  $region14: #{coord_loss.1} parent=0 // pred_check
    _
  $region15: #{coord_loss.1} parent=0 // pred_check_branch
    %16 = sbr.rel (0) target = $region17
  $region16: #{coord_loss.1} parent=0 // pred_region
    _
  $region17: #{coord_loss.1} parent=0 // pred_fallthru
    _
  %v17 = vld [vmem:[%s0] sm:$0x3]
  %v18 = vld [vmem:[%s1] sm:$0x3]
  %v19 = vsub.f32 %v17, %v18
  %v20 = vand.u32 2147483647, %v19
  %v21 = vld [vmem:[%s2] sm:$0x3]
  %v22 = vmul.f32 %v20, %v21
  %v23 = vlaneseq
  %v24 = vand.u32 %v23, 127
  %vm25 = vcmp.lt.s32.totalorder %v24, 0
  %v26 = vsub.s32 0, %v24
  %v27 = vsel %vm25, %v26, %v24
  %v28 = vmul.u32.u64.compose %v27, 2863311531
  %v29 = vextract.low.u32 %v28
  %v30 = vextract.high.u32 %v28
  %v31 = vshrl.u32 %v30, 1
  %v32 = vmul.u32 %v31, 3
  %v33 = vsub.s32 %v27, %v32
  %v34 = vsub.s32 0, %v33
  %v35 = vsel %vm25, %v34, %v33
  %vm36 = vcmp.ne.s32.totalorder %v35, 0
  %vm37 = vcmp.lt.s32.totalorder %v35, 0
  %vm38 = vmand %vm37, %vm36
  %v39 = vadd.s32 %v35, 3
  %v40 = vsel %vm38, %v39, %v35
  %vm41 = vcmp.ge.s32.totalorder %v40, 2
  %v42 = vld [vmem:[%s3] sm:$0x3]
  %44 = vset.pattern.permute.xlu0 0
  %45 = vperm.xlu0 %44, %v42
  %v46 = vpop.permute.xlu0 %45
  %v48 = vsel %vm41, %v46, 1.0
  %v49 = vmul.f32 %v22, %v48
  %vm50 = vcmask 189440
  %51 = vst.msk [vmem:[%s4] sm:$0x3] %vm50, %v49
  // Predicated region
  $region18: #{coord_loss.1} parent=0 // pred_check
    _
  $region19: #{coord_loss.1} parent=0 // pred_check_branch
    %53 = sbr.rel (0) target = $region21
  $region20: #{coord_loss.1} parent=0 // pred_region
    _
  $region21: #{coord_loss.1} parent=0 // pred_fallthru
    _
  // Predicated region
  $region22: #{coord_loss.1} parent=0 // pred_check
    _
  $region23: #{coord_loss.1} parent=0 // pred_check_branch
    %55 = sbr.rel (0) target = $region25
  $region24: #{coord_loss.1} parent=0 // pred_region
    _
  $region25: #{coord_loss.1} parent=0 // pred_fallthru
    _

</llo_original>
